<compile_context>
chip_gen: v6e
topology: v6e:2x2x1
jax: 0.10.0
libtpu: 0.0.40
codegen_flags: <defaults>
</compile_context>

<pallas_src>
import math

import jax
import jax.numpy as jnp
from jax.experimental import pallas as pl
from jax.experimental.pallas import tpu as pltpu


def _round_up(x, m):
    return ((x + m - 1) // m) * m


def rff_kernel(x_ref, bt_ref, o_ref):
    # x_ref : (TM, input_dim)      -- current batch tile
    # bt_ref: (input_dim, Mp)      -- 2*pi * B.T (lane-padded), resident across grid
    # o_ref : (TM, 2*Mp)           -- [:, :Mp]=cos, [:, Mp:]=sin (lane-aligned stores)
    mp = o_ref.shape[1] // 2
    z = jnp.dot(x_ref[...], bt_ref[...], preferred_element_type=jnp.float32)
    o_ref[:, :mp] = jnp.cos(z)
    o_ref[:, mp:] = jnp.sin(z)


def rff_forward(x, B, *, block_rows=512):
    """x: [batch, input_dim] f32, B: [mapping_size, input_dim] f32
    -> [batch, 2*mapping_size] f32 (== torch.cat([cos(2*pi*x@B.T), sin(...)], dim=1))."""
    batch, input_dim = x.shape
    mapping_size, _ = B.shape

    x = x.astype(jnp.float32)

    # Fold the 2*pi scale into the constant weight once, outside the kernel,
    # and pad the mapping dim up to a lane multiple for dense/aligned stores.
    mp = _round_up(mapping_size, 128)
    bt = (2.0 * math.pi) * B.T.astype(jnp.float32)        # [input_dim, mapping_size]
    if mp != mapping_size:
        bt = jnp.pad(bt, ((0, 0), (0, mp - mapping_size)))  # [input_dim, Mp]

    # --- choose the batch tile ---------------------------------------------
    # Start from ~512 rows (amortizes the ~0.35us/step overhead, keeps the EUP
    # busy while DMAs hide underneath), shrink until the 2x-buffered working
    # set fits a conservative VMEM budget (v7x-safe).
    def vmem_estimate(tm):
        x_blk = 2 * tm * input_dim        # double-buffered input tile
        o_blk = 2 * tm * 2 * mp           # double-buffered output tile
        b_blk = 2 * input_dim * mp        # resident B.T (2 bufs worst case)
        return 4 * (x_blk + o_blk + b_blk)  # f32 bytes

    budget = 24 * 1024 * 1024             # headroom under 32 MiB scoped default
    tm = max(min(block_rows, _round_up(batch, 8)), 8)
    tm = _round_up(tm, 8)
    while tm > 8 and vmem_estimate(tm) > budget:
        tm //= 2
    tm = max(_round_up(tm, 8), 8)

    padded_batch = _round_up(batch, tm)
    if padded_batch != batch:
        x = jnp.pad(x, ((0, padded_batch - batch), (0, 0)))

    grid = (padded_batch // tm,)

    out = pl.pallas_call(
        rff_kernel,
        out_shape=jax.ShapeDtypeStruct((padded_batch, 2 * mp), jnp.float32),
        grid_spec=pl.GridSpec(
            grid=grid,
            in_specs=[
                # batch tile of x
                pl.BlockSpec((tm, input_dim), lambda i: (i, 0)),
                # whole (2*pi*B.T) stays resident across the grid (constant index_map)
                pl.BlockSpec((input_dim, mp), lambda i: (0, 0)),
            ],
            # (TM, 2*Mp): multiple of (8, 128) -> dense, unmasked stores
            out_specs=pl.BlockSpec((tm, 2 * mp), lambda i: (i, 0)),
        ),
        compiler_params=pltpu.CompilerParams(
            # batch tiles are independent -> shard across v7x's 2 TensorCores
            dimension_semantics=("parallel",),
            vmem_limit_bytes=int(
                min(max(2 * vmem_estimate(tm), 16 * 1024 * 1024), 64 * 1024 * 1024)
            ),
        ),
    )(x, bt)

    if mp == mapping_size:
        # Common RFF config (mapping_size % 128 == 0): kernel output is final.
        return out if padded_batch == batch else out[:batch]

    # Unaligned mapping_size: drop the lane padding of each half and re-join.
    out = out[:batch]
    return jnp.concatenate(
        [out[:, :mapping_size], out[:, mp:mp + mapping_size]], axis=1
    )


def rff_reference(x, B):
    z = 2.0 * math.pi * (x @ B.T)
    return jnp.concatenate([jnp.cos(z), jnp.sin(z)], axis=1)


if __name__ == "__main__":
    key = jax.random.PRNGKey(0)
    k_x, k_b, k_x2, k_b2, k_x3, k_b3 = jax.random.split(key, 6)

    # 1) Small shapes consistent with the module defaults (unaligned mapping_size).
    batch, input_dim, mapping_size, scale = 8, 4, 32, 1.0
    B = scale * jax.random.normal(k_b, (mapping_size, input_dim), dtype=jnp.float32)
    x = jax.random.normal(k_x, (batch, input_dim), dtype=jnp.float32)

    out = jax.block_until_ready(rff_forward(x, B))
    ref = rff_reference(x, B)
    assert out.shape == (batch, 2 * mapping_size)
    assert jnp.allclose(out, ref, atol=1e-5, rtol=1e-5)

    # 2) Lane-aligned mapping_size (zero-copy path) + batch not a multiple of tile.
    batch2, input_dim2, mapping_size2 = 130, 6, 128
    B2 = jax.random.normal(k_b2, (mapping_size2, input_dim2), dtype=jnp.float32)
    x2 = jax.random.normal(k_x2, (batch2, input_dim2), dtype=jnp.float32)

    out2 = jax.block_until_ready(rff_forward(x2, B2))
    ref2 = rff_reference(x2, B2)
    assert out2.shape == (batch2, 2 * mapping_size2)
    assert jnp.allclose(out2, ref2, atol=1e-5, rtol=1e-5)

    # 3) Both paddings at once (unaligned mapping_size and padded batch).
    batch3, input_dim3, mapping_size3 = 130, 6, 96
    B3 = jax.random.normal(k_b3, (mapping_size3, input_dim3), dtype=jnp.float32)
    x3 = jax.random.normal(k_x3, (batch3, input_dim3), dtype=jnp.float32)

    out3 = jax.block_until_ready(rff_forward(x3, B3))
    ref3 = rff_reference(x3, B3)
    assert out3.shape == (batch3, 2 * mapping_size3)
    assert jnp.allclose(out3, ref3, atol=1e-5, rtol=1e-5)

    print("KERNEL_OK")
</pallas_src>

<mosaic_0001>
module attributes {stable_mosaic.version = 11 : i64} {
  func.func @rff_kernel(%arg0: i32, %arg1: memref<8x4xf32, #tpu.memory_space<vmem>>, %arg2: memref<4x128xf32, #tpu.memory_space<vmem>>, %arg3: memref<8x256xf32, #tpu.memory_space<vmem>>) attributes {dimension_semantics = [#tpu.dimension_semantics<parallel>], iteration_bounds = array<i64: 1>, scalar_prefetch = 0 : i64, scratch_operands = 0 : i64, tpu.core_type = #tpu.core_type<tc>, window_params = [{transform_indices = @transform_0, window_bounds = array<i64: 8, 4>}, {pipeline_mode = #tpu.pipeline_mode<synchronous>, transform_indices = @transform_1, window_bounds = array<i64: 4, 128>}, {transform_indices = @transform_2, window_bounds = array<i64: 8, 256>}]} {
    %c0 = arith.constant 0 : index
    %c0_0 = arith.constant 0 : index
    %0 = vector.load %arg1[%c0, %c0_0] : memref<8x4xf32, #tpu.memory_space<vmem>>, vector<8x4xf32>
    %c0_1 = arith.constant 0 : index
    %c0_2 = arith.constant 0 : index
    %1 = vector.load %arg2[%c0_1, %c0_2] : memref<4x128xf32, #tpu.memory_space<vmem>>, vector<4x128xf32>
    %cst = arith.constant dense<0.000000e+00> : vector<8x128xf32>
    %2 = tpu.matmul %0, %1, %cst {dimension_numbers = #tpu.dot_dimension_numbers<[1], [0], [0], [1], [0, 0, 1, 1], [], []>} : vector<8x4xf32>, vector<4x128xf32>, vector<8x128xf32> -> vector<8x128xf32>
    %3 = math.cos %2 : vector<8x128xf32>
    %c0_3 = arith.constant 0 : index
    %c0_4 = arith.constant 0 : index
    %4 = vector.load %arg3[%c0_3, %c0_4] : memref<8x256xf32, #tpu.memory_space<vmem>>, vector<8x128xf32>
    tpu.vector_store %arg3[%c0_3, %c0_4], %3 {strides = array<i32>} : memref<8x256xf32, #tpu.memory_space<vmem>>, vector<8x128xf32>,
    %5 = math.sin %2 : vector<8x128xf32>
    %c0_5 = arith.constant 0 : index
    %c128 = arith.constant 128 : index
    %6 = vector.load %arg3[%c0_5, %c128] : memref<8x256xf32, #tpu.memory_space<vmem>>, vector<8x128xf32>
    tpu.vector_store %arg3[%c0_5, %c128], %5 {strides = array<i32>} : memref<8x256xf32, #tpu.memory_space<vmem>>, vector<8x128xf32>,
    return
  }
  func.func @transform_0(%arg0: i32) -> (i32, i32) {
    %c0_i32 = arith.constant 0 : i32
    %c0_i32_0 = arith.constant 0 : i32
    return %arg0, %c0_i32 : i32, i32
  }
  func.func @transform_1(%arg0: i32) -> (i32, i32) {
    %c0_i32 = arith.constant 0 : i32
    %c0_i32_0 = arith.constant 0 : i32
    %c0_i32_1 = arith.constant 0 : i32
    return %c0_i32, %c0_i32_0 : i32, i32
  }
  func.func @transform_2(%arg0: i32) -> (i32, i32) {
    %c0_i32 = arith.constant 0 : i32
    %c0_i32_0 = arith.constant 0 : i32
    return %arg0, %c0_i32 : i32, i32
  }
}

</mosaic_0001>

<llo_original>
// kernel: tpu_custom_call.1
$region0: #{tpu_custom_call.1}
  #allocation0 [shape = 'u32[]', space=smem, size = 0x4, offset = 0x4, fixed_abs, tag = 'smem constant byte address 0x4 - core index']
  #allocation1 [shape = 'u32[144,128]{1,0:T(1,128)}', space=vmem, size = 0x12000, scoped, tag = 'internal scratch']
  %s0 = inlined_call_operand.vmem [shape: f32[8,4], index: 0, kind: input, shape index: {}]
  %s1 = inlined_call_operand.vmem [shape: f32[4,128], index: 1, kind: input, shape index: {}]
  %s2 = inlined_call_operand.hbm [shape: f32[8,256], index: 2, kind: output, shape index: {}]
  %s3 = sld [smem:[#allocation0]]
  $region18: #{tpu_custom_call.1} parent=0
    _
  %s5 = ssub.s32 1, %s3
  %s6 = scalar_select 0, %s5, %s3
  $region1: #{tpu_custom_call.1} parent=0
    #allocation2 [shape = 'u8[8192]{0}', space=vmem, size = 0x2000, scoped, tag = 'output window, operand 0, single buffered']
    #allocation3 [shape = 's32[1]{0}', space=sflag, size = 0x4, scoped, tag = 'scoped memory for tpu_custom_call.1']
    %7 = vsyncpa [#allocation3], 0
    // Predicated region
    $region2: #{tpu_custom_call.1} parent=1 // pred_check
      _
    $region3: #{tpu_custom_call.1} parent=1 // pred_check_branch
      %9 = sbr.rel (0) target = $region5
    $region4: #{tpu_custom_call.1} parent=1 // pred_region
      _
    $region5: #{tpu_custom_call.1} parent=1 // pred_fallthru
      _
    // Predicated region
    $region6: #{tpu_custom_call.1} parent=1 // pred_check
      _
    $region7: #{tpu_custom_call.1} parent=1 // pred_check_branch
      %11 = sbr.rel (0) target = $region9
    $region8: #{tpu_custom_call.1} parent=1 // pred_region
      _
    $region9: #{tpu_custom_call.1} parent=1 // pred_fallthru
      _
    %v12 = vld [vmem:[%s0] sm:$0xff]
    %v13 = vld [vmem:[%s1] sm:$0xf]
    %vm14 = vcmask 31744
    %v16 = vsel %vm14, %v12, 0
    %vm18 = vcmask 1043456
    %v20 = vsel %vm18, %v13, 0
    %22 = vmatprep.subr.mxu0 0.0
    %23 = vmatpush1.msra.mxu0 0.0
    %24 = vmatprep.subr.mxu0 0.0
    %25 = vmatpush1.msra.mxu0 0.0
    %26 = vmatprep.subr.mxu0 0.0
    %27 = vmatpush1.msra.mxu0 0.0
    %28 = vmatprep.subr.mxu0 0.0
    %29 = vmatpush1.msra.mxu0 0.0
    %30 = vmatprep.subr.mxu0 0.0
    %31 = vmatpush1.msra.mxu0 0.0
    %32 = vmatprep.subr.mxu0 0.0
    %33 = vmatpush1.msra.mxu0 0.0
    %34 = vmatprep.subr.mxu0 0.0
    %35 = vmatpush1.msra.mxu0 0.0
    %36 = vmatprep.subr.mxu0 0.0
    %37 = vmatpush1.msra.mxu0 0.0
    %38 = vmatprep.subr.mxu0 0.0
    %39 = vmatpush1.msra.mxu0 0.0
    %40 = vmatprep.subr.mxu0 0.0
    %41 = vmatpush1.msra.mxu0 0.0
    %42 = vmatprep.subr.mxu0 0.0
    %43 = vmatpush1.msra.mxu0 0.0
    %44 = vmatprep.subr.mxu0 0.0
    %45 = vmatpush1.msra.mxu0 0.0
    %46 = vmatprep.subr.mxu0 0.0
    %47 = vmatpush1.msra.mxu0 0.0
    %48 = vmatprep.subr.mxu0 0.0
    %49 = vmatpush1.msra.mxu0 0.0
    %50 = vmatprep.subr.mxu0 0.0
    %51 = vmatpush1.msra.mxu0 0.0
    %52 = vmatprep.subr.mxu0 0.0
    %53 = vmatpush1.msra.mxu0 %v20
    %54 = vmatprep.subr.mxu0 0.0
    %55 = vmatpush2.msra.mxu0 0.0
    %56 = vmatprep.subr.mxu0 0.0
    %57 = vmatpush2.msra.mxu0 0.0
    %58 = vmatprep.subr.mxu0 0.0
    %59 = vmatpush2.msra.mxu0 0.0
    %60 = vmatprep.subr.mxu0 0.0
    %61 = vmatpush2.msra.mxu0 0.0
    %62 = vmatprep.subr.mxu0 0.0
    %63 = vmatpush2.msra.mxu0 0.0
    %64 = vmatprep.subr.mxu0 0.0
    %65 = vmatpush2.msra.mxu0 0.0
    %66 = vmatprep.subr.mxu0 0.0
    %67 = vmatpush2.msra.mxu0 0.0
    %68 = vmatprep.subr.mxu0 0.0
    %69 = vmatpush2.msra.mxu0 0.0
    %70 = vmatprep.subr.mxu0 0.0
    %71 = vmatpush2.msra.mxu0 0.0
    %72 = vmatprep.subr.mxu0 0.0
    %73 = vmatpush2.msra.mxu0 0.0
    %74 = vmatprep.subr.mxu0 0.0
    %75 = vmatpush2.msra.mxu0 0.0
    %76 = vmatprep.subr.mxu0 0.0
    %77 = vmatpush2.msra.mxu0 0.0
    %78 = vmatprep.subr.mxu0 0.0
    %79 = vmatpush2.msra.mxu0 0.0
    %80 = vmatprep.subr.mxu0 0.0
    %81 = vmatpush2.msra.mxu0 0.0
    %82 = vmatprep.subr.mxu0 0.0
    %83 = vmatpush2.msra.mxu0 0.0
    %84 = vmatprep.subr.mxu0 0.0
    %85 = vmatpush2.msra.mxu0 0.0
    %86 = vmatprep.mubr.f32.mxu0 0.0
    %87 = vmatmul.mubr.f32.gmra.mxu0 %v16
    %v88 = vpop.f32.mrf.mxu0
    %v89 = vadd.f32 0.0, %v88
    %v90 = vpop.f32.mrf.mxu0
    %91 = vdwg.mxu0
    %v92 = vand.u32 2147483647, %v89
    %vm93 = vcmp.le.f32.partialorder %v92, 0.7853982
    %vm94 = vcmp.lt.s32.totalorder %v89, 0
    %v95 = vand.u32 %v89, 2139095040
    %v96 = vshrl.u32 %v95, 23
    %v97 = vsub.s32 %v96, 127
    %v98 = vand.u32 2147483647, %v89
    %v99 = vand.u32 %v98, 8388607
    %v100 = vor.u32 %v99, 8388608
    %v101 = vsub.s32 0, %v100
    %v102 = vadd.s32 %v97, 1
    %vm103 = vcmp.gt.s32.totalorder %v102, 0
    %v104 = vsel %vm103, %v102, 0
    %v105 = vshrl.u32 %v104, 5
    %v106 = vand.u32 %v104, 31
    %v107 = vsub.s32 32, %v106
    %v108 = vshrl.u32 683565275, %v107
    %v109 = vshll.u32 683565275, %v106
    %v110 = vshrl.u32 2475754826, %v107
    %v111 = vor.u32 %v109, %v110
    %v112 = vshll.u32 2475754826, %v106
    %v113 = vshrl.u32 2131351028, %v107
    %v114 = vor.u32 %v112, %v113
    %v115 = vshll.u32 2131351028, %v106
    %v116 = vshrl.u32 2102212464, %v107
    %v117 = vor.u32 %v115, %v116
    %v118 = vshll.u32 2102212464, %v106
    %v119 = vshrl.u32 920167782, %v107
    %v120 = vor.u32 %v118, %v119
    %v121 = vshll.u32 920167782, %v106
    %v122 = vshrl.u32 1326507024, %v107
    %v123 = vor.u32 %v121, %v122
    %vm124 = vcmp.lt.s32.totalorder %v105, 1
    %vm125 = vcmp.lt.s32.totalorder %v105, 2
    %vm126 = vcmp.lt.s32.totalorder %v105, 3
    %vm127 = vcmp.lt.s32.totalorder %v105, 4
    %v128 = vsel %vm124, %v108, %v111
    %v129 = vsel %vm127, %v117, 2102212464
    %v130 = vsel %vm126, %v114, %v129
    %v131 = vsel %vm125, %v128, %v130
    %v132 = vsel %vm124, %v111, %v114
    %v133 = vsel %vm127, %v120, 920167782
    %v134 = vsel %vm126, %v117, %v133
    %v135 = vsel %vm125, %v132, %v134
    %v136 = vsel %vm124, %v114, %v117
    %v137 = vsel %vm127, %v123, 1326507024
    %v138 = vsel %vm126, %v120, %v137
    %v139 = vsel %vm125, %v136, %v138
    %v140 = vshll.u32 %v100, 8
    %v141 = vmul.u32.u64.compose %v140, %v139
    %v142 = vextract.low.u32 %v141
    %v143 = vextract.high.u32 %v141
    %v144 = vmul.u32.u64.compose %v140, %v135
    %v145 = vextract.low.u32 %v144
    %v146 = vextract.high.u32 %v144
    %v147 = vmul.u32 %v140, %v131
    %v148 = vadd.s32 %v143, %v145
    %vm149 = vc.u32 %v143, %v145
    %v150 = vadd.s32 %v146, 1
    %v151 = vsel %vm149, %v150, %v146
    %v152 = vadd.s32 %v147, %v151
    %v153 = vadd.s32 %v152, 536870912
    %v154 = vshrl.u32 %v153, 30
    %v155 = vshll.u32 %v154, 30
    %v156 = vsub.s32 %v152, %v155
    %vm157 = vcmp.lt.s32.totalorder %v156, 0
    %v158 = vsub.s32 0, %v156
    %v159 = vsel %vm157, %v158, %v156
    %v160 = vclz %v159
    %v161 = vsub.s32 %v160, 2
    %vm162 = vcmp.gt.s32.totalorder 0, %v161
    %v163 = vsel %vm162, 0, %v161
    %v164 = vsub.s32 32, %v163
    %v165 = vshll.u32 %v156, %v163
    %v166 = vshrl.u32 %v148, %v164
    %v167 = vor.u32 %v165, %v166
    %v168 = vsub.s32 4294967266, %v163
    %v169 = vadd.s32 %v168, 127
    %v170 = vshll.u32 %v169, 23
    %v171 = vor.u32 4788187, %v170
    %v172 = vand.u32 2147483647, %v171
    %v174 = vcvt.s32.f32 %v167
    %v175 = vmul.f32 %v174, %v172
    %v176 = vxor.u32 %v175, 2147483648
    %v177 = vsel %vm94, %v176, %v175
    %v178 = vsub.s32 4, %v154
    %v179 = vsel %vm94, %v178, %v154
    %v180 = vsel %vm93, %v89, %v177
    %v181 = vsel %vm93, 0, %v179
    %v182 = vcosq.f32.pop %v180
    %v183 = vsinq.f32.pop %v180
    %vm184 = vweird.f32 %v89
    %v185 = vand.u32 %v181, 3
    %vm186 = vcmp.lt.s32.totalorder %v185, 2
    %vm187 = vcmp.eq.s32.totalorder %v185, 0
    %v188 = vxor.u32 %v183, 2147483648
    %v189 = vsel %vm187, %v182, %v188
    %vm190 = vcmp.eq.s32.totalorder %v185, 2
    %v191 = vxor.u32 %v182, 2147483648
    %v192 = vsel %vm190, %v191, %v183
    %v193 = vsel %vm186, %v189, %v192
    %v194 = vsel %vm184, nan, %v193
    %195 = vst [vmem:[#allocation2] sm:$0xff] %v194
    %v196 = vand.u32 2147483647, %v89
    %vm197 = vcmp.le.f32.partialorder %v196, 0.7853982
    %vm198 = vcmp.lt.s32.totalorder %v89, 0
    %v199 = vand.u32 %v89, 2139095040
    %v200 = vshrl.u32 %v199, 23
    %v201 = vsub.s32 %v200, 127
    %v202 = vand.u32 2147483647, %v89
    %v203 = vand.u32 %v202, 8388607
    %v204 = vor.u32 %v203, 8388608
    %v205 = vsub.s32 0, %v204
    %v206 = vadd.s32 %v201, 1
    %vm207 = vcmp.gt.s32.totalorder %v206, 0
    %v208 = vsel %vm207, %v206, 0
    %v209 = vshrl.u32 %v208, 5
    %v210 = vand.u32 %v208, 31
    %v211 = vsub.s32 32, %v210
    %v212 = vshrl.u32 683565275, %v211
    %v213 = vshll.u32 683565275, %v210
    %v214 = vshrl.u32 2475754826, %v211
    %v215 = vor.u32 %v213, %v214
    %v216 = vshll.u32 2475754826, %v210
    %v217 = vshrl.u32 2131351028, %v211
    %v218 = vor.u32 %v216, %v217
    %v219 = vshll.u32 2131351028, %v210
    %v220 = vshrl.u32 2102212464, %v211
    %v221 = vor.u32 %v219, %v220
    %v222 = vshll.u32 2102212464, %v210
    %v223 = vshrl.u32 920167782, %v211
    %v224 = vor.u32 %v222, %v223
    %v225 = vshll.u32 920167782, %v210
    %v226 = vshrl.u32 1326507024, %v211
    %v227 = vor.u32 %v225, %v226
    %vm228 = vcmp.lt.s32.totalorder %v209, 1
    %vm229 = vcmp.lt.s32.totalorder %v209, 2
    %vm230 = vcmp.lt.s32.totalorder %v209, 3
    %vm231 = vcmp.lt.s32.totalorder %v209, 4
    %v232 = vsel %vm228, %v212, %v215
    %v233 = vsel %vm231, %v221, 2102212464
    %v234 = vsel %vm230, %v218, %v233
    %v235 = vsel %vm229, %v232, %v234
    %v236 = vsel %vm228, %v215, %v218
    %v237 = vsel %vm231, %v224, 920167782
    %v238 = vsel %vm230, %v221, %v237
    %v239 = vsel %vm229, %v236, %v238
    %v240 = vsel %vm228, %v218, %v221
    %v241 = vsel %vm231, %v227, 1326507024
    %v242 = vsel %vm230, %v224, %v241
    %v243 = vsel %vm229, %v240, %v242
    %v244 = vshll.u32 %v204, 8
    %v245 = vmul.u32.u64.compose %v244, %v243
    %v246 = vextract.low.u32 %v245
    %v247 = vextract.high.u32 %v245
    %v248 = vmul.u32.u64.compose %v244, %v239
    %v249 = vextract.low.u32 %v248
    %v250 = vextract.high.u32 %v248
    %v251 = vmul.u32 %v244, %v235
    %v252 = vadd.s32 %v247, %v249
    %vm253 = vc.u32 %v247, %v249
    %v254 = vadd.s32 %v250, 1
    %v255 = vsel %vm253, %v254, %v250
    %v256 = vadd.s32 %v251, %v255
    %v257 = vadd.s32 %v256, 536870912
    %v258 = vshrl.u32 %v257, 30
    %v259 = vshll.u32 %v258, 30
    %v260 = vsub.s32 %v256, %v259
    %vm261 = vcmp.lt.s32.totalorder %v260, 0
    %v262 = vsub.s32 0, %v260
    %v263 = vsel %vm261, %v262, %v260
    %v264 = vclz %v263
    %v265 = vsub.s32 %v264, 2
    %vm266 = vcmp.gt.s32.totalorder 0, %v265
    %v267 = vsel %vm266, 0, %v265
    %v268 = vsub.s32 32, %v267
    %v269 = vshll.u32 %v260, %v267
    %v270 = vshrl.u32 %v252, %v268
    %v271 = vor.u32 %v269, %v270
    %v272 = vsub.s32 4294967266, %v267
    %v273 = vadd.s32 %v272, 127
    %v274 = vshll.u32 %v273, 23
    %v275 = vor.u32 4788187, %v274
    %v276 = vand.u32 2147483647, %v275
    %v278 = vcvt.s32.f32 %v271
    %v279 = vmul.f32 %v278, %v276
    %v280 = vxor.u32 %v279, 2147483648
    %v281 = vsel %vm198, %v280, %v279
    %v282 = vsub.s32 4, %v258
    %v283 = vsel %vm198, %v282, %v258
    %v284 = vsel %vm197, %v89, %v281
    %v285 = vsel %vm197, 0, %v283
    %v286 = vcosq.f32.pop %v284
    %v287 = vsinq.f32.pop %v284
    %vm288 = vweird.f32 %v89
    %v289 = vadd.s32 %v285, 3
    %v290 = vand.u32 %v289, 3
    %vm291 = vcmp.lt.s32.totalorder %v290, 2
    %vm292 = vcmp.eq.s32.totalorder %v290, 0
    %v293 = vxor.u32 %v287, 2147483648
    %v294 = vsel %vm292, %v286, %v293
    %vm295 = vcmp.eq.s32.totalorder %v290, 2
    %v296 = vxor.u32 %v286, 2147483648
    %v297 = vsel %vm295, %v296, %v287
    %v298 = vsel %vm291, %v294, %v297
    %v299 = vsel %vm288, nan, %v298
    %300 = vst [vmem:[#allocation2 + $0x8] sm:$0xff] %v299
    // Predicated region
    $region10: #{tpu_custom_call.1} parent=1 // pred_check
      _
    $region11: #{tpu_custom_call.1} parent=1 // pred_check_branch
      %302 = sbr.rel (0) target = $region13
    $region12: #{tpu_custom_call.1} parent=1 // pred_region
      %s304 = ssub.s32 256, 256
      %305 = vsyncadd [#allocation3], %s304
      %s307 = sshll.u32 [#allocation2], 4
      %s308 = int_to_ptr.vmem [resolvable:$true] %s307
      %310 = dma.vmem_to_hbm [thread:$0]  %s308, 256, %s2, [#allocation3]
    $region13: #{tpu_custom_call.1} parent=1 // pred_fallthru
      _
    // Predicated region
    $region14: #{tpu_custom_call.1} parent=1 // pred_check
      _
    $region15: #{tpu_custom_call.1} parent=1 // pred_check_branch
      %312 = sbr.rel (0) target = $region17
    $region16: #{tpu_custom_call.1} parent=1 // pred_region
      %313 = dma.done [#allocation3], 256
    $region17: #{tpu_custom_call.1} parent=1 // pred_fallthru
      _
    %314 = vsyncpa [#allocation3], 1

</llo_original>
